<compile_context>
chip_gen: v7x
topology: tpu7x:2x2x1
jax: 0.10.0
libtpu: 0.0.40
codegen_flags: <defaults>
</compile_context>

<pallas_src>
import functools

import jax
import jax.numpy as jnp
import numpy as np
from jax.experimental import pallas as pl
from jax.experimental.pallas import tpu as pltpu


def _round_up(n, m):
    return ((n + m - 1) // m) * m


def _jacobikan_kernel(x_ref, c_ref, o_ref, p_ref, *, degree, a, b, i_pad):
    """x_ref: (tile, I_pad) f32 input tile
       c_ref: ((D+1)*I_pad, tn)  fused coeffs (degree-major rows), matmul dtype
       o_ref: (tile, tn) f32 output tile
       p_ref: (tile, (D+1)*I_pad) scratch slab of Jacobi polys, matmul dtype."""

    # Build the polynomial slab once per row tile; reuse across output tiles.
    @pl.when(pl.program_id(1) == 0)
    def _build_slab():
        x = x_ref[...]
        if x.dtype != jnp.float32:
            x = x.astype(jnp.float32)        # keep the recurrence in f32
        x = jnp.tanh(x)

        p_km2 = jnp.ones_like(x)                               # P_0 = 1
        p_ref[:, 0:i_pad] = p_km2.astype(p_ref.dtype)
        p_km1 = p_km2
        if degree > 0:
            p_km1 = (a - b + (a + b + 2.0) * x) * 0.5          # P_1
            p_ref[:, i_pad:2 * i_pad] = p_km1.astype(p_ref.dtype)
        for d in range(2, degree + 1):
            # theta_* are Python-constant folds.
            theta_k = (2 * d + a + b) * (2 * d + a + b - 1) / (2 * d * (d + a + b))
            theta_k1 = ((2 * d + a + b - 1) * (a * a - b * b)
                        / (2 * d * (d + a + b) * (2 * d + a + b - 2)))
            theta_k2 = ((d + a - 1) * (d + b - 1) * (2 * d + a + b)
                        / (d * (d + a + b) * (2 * d + a + b - 2)))
            p_k = (theta_k * x + theta_k1) * p_km1 - theta_k2 * p_km2
            p_ref[:, d * i_pad:(d + 1) * i_pad] = p_k.astype(p_ref.dtype)
            p_km2, p_km1 = p_km1, p_k

    # One MXU matmul: K = (D+1)*I_pad, output tile tn columns.
    o_ref[...] = jnp.dot(p_ref[...], c_ref[...],
                         preferred_element_type=jnp.float32).astype(o_ref.dtype)


def jacobikan_forward(x, jacobi_coeffs, *, degree, a=1.0, b=1.0,
                      row_tile=None, matmul_dtype=jnp.bfloat16):
    """x: any shape with trailing dim == input_dim (flattened as in PyTorch).
    jacobi_coeffs: (input_dim, output_dim, degree + 1)."""
    input_dim, output_dim, dp1 = jacobi_coeffs.shape
    assert dp1 == degree + 1

    xf = x.reshape(-1, input_dim)
    rows = xf.shape[0]

    # Lane-dense padded feature sizes (128 lanes).
    # TODO(synk): for input_dim << 128 pack K as round_up((D+1)*input_dim, 128)
    # instead of (D+1)*round_up(input_dim, 128) to avoid padded MXU work.
    i_pad = _round_up(input_dim, 128)
    o_pad = _round_up(output_dim, 128)

    # Adaptive row tile: bigger tiles when feature dims are small (mem/EUP
    # bound regime); sublane-aligned, rows zero-padded so any batch works.
    if row_tile is None:
        row_tile = 512 if (i_pad <= 512 and o_pad <= 512) else 256
    tile = max(8, min(_round_up(int(row_tile), 8), _round_up(rows, 8)))
    rows_pad = _round_up(rows, tile)

    # Output-column tile: a divisor of o_pad, multiple of 128, <= 512, with the
    # resident coefficient tile bounded (~20 MiB) so it fits v7x VMEM.
    mdt_bytes = jnp.dtype(matmul_dtype).itemsize
    n128 = o_pad // 128
    g = 1
    for cand in range(1, n128 + 1):
        if n128 % cand:
            continue
        if 128 * cand > 512:
            break
        if dp1 * i_pad * (128 * cand) * mdt_bytes * 2 <= (20 << 20):
            g = cand
    tn = 128 * g
    nj = o_pad // tn

    # Zero-pad rows and input columns.  Padded columns see tanh(0)=0 and
    # P_0=1, but their coefficient rows are zero, so they contribute nothing.
    xf = jnp.pad(xf, ((0, rows_pad - rows), (0, i_pad - input_dim)))
    xf = xf.astype(jnp.float32)

    # (I, O, D+1) -> (D+1, I, O) -> zero-pad I/O -> fuse to ((D+1)*I_pad, O_pad)
    # so row index d*I_pad + i matches the in-kernel slab layout.
    c = jnp.transpose(jacobi_coeffs, (2, 0, 1))
    c = jnp.pad(c, ((0, 0), (0, i_pad - input_dim), (0, o_pad - output_dim)))
    c_fused = c.reshape(dp1 * i_pad, o_pad).astype(matmul_dtype)

    kernel = functools.partial(_jacobikan_kernel, degree=degree,
                               a=float(a), b=float(b), i_pad=i_pad)

    # VMEM budget: x (2 bufs, f32) + out (2 bufs, f32) + coeff tile (1 or 2
    # bufs, matmul dtype) + poly scratch slab + recurrence temporaries + slack.
    f4 = 4
    needed = (2 * tile * i_pad * f4
              + 2 * tile * tn * f4
              + (1 if nj == 1 else 2) * dp1 * i_pad * tn * mdt_bytes
              + tile * dp1 * i_pad * mdt_bytes
              + 6 * tile * i_pad * f4
              + (4 << 20))

    # Generation-aware VMEM limit: never below what we need, never above ~90%
    # of physical capacity (64 MiB on v7x, 128 MiB on v5e/v6e).
    try:
        info = pltpu.get_tpu_info()
        vmem_cap = int(getattr(info, "vmem_capacity_bytes", 64 << 20))
    except Exception:  # conservative fallback if the query is unavailable
        vmem_cap = 64 << 20
    vmem_limit = min(max(int(needed * 1.25), 32 << 20), int(vmem_cap * 0.9))
    vmem_limit = max(vmem_limit, int(needed))
    vmem_limit = int(min(vmem_limit, vmem_cap))

    cost = pl.CostEstimate(
        flops=2 * rows_pad * dp1 * i_pad * o_pad,
        transcendentals=rows_pad * i_pad,
        bytes_accessed=(xf.size * f4 + c_fused.size * mdt_bytes
                        + rows_pad * o_pad * f4))

    def _build_call(single_buffer_coeffs):
        coeff_kwargs = {}
        if single_buffer_coeffs:
            # Constant block index across the whole grid -> one resident buffer.
            coeff_kwargs["pipeline_mode"] = pl.Buffered(1)
        grid_spec = pltpu.PrefetchScalarGridSpec(
            num_scalar_prefetch=0,
            grid=(rows_pad // tile, nj),
            in_specs=[
                pl.BlockSpec((tile, i_pad), lambda i, j: (i, 0)),
                pl.BlockSpec((dp1 * i_pad, tn), lambda i, j: (0, j),
                             **coeff_kwargs),
            ],
            out_specs=pl.BlockSpec((tile, tn), lambda i, j: (i, j)),
            scratch_shapes=[pltpu.VMEM((tile, dp1 * i_pad), matmul_dtype)],
        )
        return pl.pallas_call(
            kernel,
            out_shape=jax.ShapeDtypeStruct((rows_pad, o_pad), jnp.float32),
            grid_spec=grid_spec,
            compiler_params=pltpu.CompilerParams(
                dimension_semantics=("parallel", "arbitrary"),
                vmem_limit_bytes=vmem_limit),
            cost_estimate=cost,
        )

    try:
        out = _build_call(nj == 1)(xf, c_fused)
    except Exception:
        # Robust fallback if single-buffering is rejected by this JAX version.
        out = _build_call(False)(xf, c_fused)

    return out[:rows, :output_dim]


def jacobikan_reference(x, jacobi_coeffs, *, degree, a=1.0, b=1.0):
    """Pure-JAX reference mirroring the PyTorch forward."""
    input_dim = jacobi_coeffs.shape[0]
    xf = jnp.tanh(x.reshape(-1, input_dim))
    polys = [jnp.ones_like(xf)]
    if degree > 0:
        polys.append((a - b + (a + b + 2.0) * xf) * 0.5)
    for i in range(2, degree + 1):
        theta_k = (2 * i + a + b) * (2 * i + a + b - 1) / (2 * i * (i + a + b))
        theta_k1 = ((2 * i + a + b - 1) * (a * a - b * b)
                    / (2 * i * (i + a + b) * (2 * i + a + b - 2)))
        theta_k2 = ((i + a - 1) * (i + b - 1) * (2 * i + a + b)
                    / (i * (i + a + b) * (2 * i + a + b - 2)))
        polys.append((theta_k * xf + theta_k1) * polys[-1] - theta_k2 * polys[-2])
    jac = jnp.stack(polys, axis=-1)  # (rows, I, D+1)
    return jnp.einsum('bid,iod->bo', jac, jacobi_coeffs)


if __name__ == "__main__":
    input_dim, output_dim, degree = 32, 16, 4
    a_coef, b_coef = 1.0, 1.0

    key = jax.random.PRNGKey(0)
    kx, kc = jax.random.split(key)

    # module parameter: normal(mean=0, std=1/(input_dim*(degree+1)))
    std = 1.0 / (input_dim * (degree + 1))
    jacobi_coeffs = (jax.random.normal(kc, (input_dim, output_dim, degree + 1),
                                       dtype=jnp.float32) * std)

    # example input: (batch=2, seq=8, input_dim) -> flattened to 16 rows
    x = jax.random.normal(kx, (2, 8, input_dim), dtype=jnp.float32)

    y = jacobikan_forward(x, jacobi_coeffs, degree=degree, a=a_coef, b=b_coef)
    y = jax.block_until_ready(y)

    y_ref = jacobikan_reference(x, jacobi_coeffs, degree=degree,
                                a=a_coef, b=b_coef)
    # Tolerance relaxed for bf16 MXU operands (accumulation stays f32).
    np.testing.assert_allclose(np.asarray(y), np.asarray(y_ref),
                               rtol=2e-2, atol=1e-3)
    assert y.shape == (16, output_dim)

    print("KERNEL_OK")
</pallas_src>

<mosaic_0001>
module attributes {stable_mosaic.version = 11 : i64} {
  func.func @_jacobikan_kernel(%arg0: i32, %arg1: i32, %arg2: memref<16x128xf32, #tpu.memory_space<vmem>>, %arg3: memref<640x128xbf16, #tpu.memory_space<vmem>>, %arg4: memref<16x128xf32, #tpu.memory_space<vmem>>, %arg5: memref<16x640xbf16, #tpu.memory_space<vmem>>) attributes {dimension_semantics = [#tpu.dimension_semantics<parallel>, #tpu.dimension_semantics<arbitrary>], iteration_bounds = array<i64: 1, 1>, scalar_prefetch = 0 : i64, scratch_operands = 1 : i64, tpu.core_type = #tpu.core_type<tc>, window_params = [{transform_indices = @transform_0, window_bounds = array<i64: 16, 128>}, {pipeline_mode = #tpu.pipeline_mode<synchronous>, transform_indices = @transform_1, window_bounds = array<i64: 640, 128>}, {transform_indices = @transform_2, window_bounds = array<i64: 16, 128>}]} {
    %c0_i32 = arith.constant 0 : i32
    %0 = arith.cmpi eq, %arg1, %c0_i32 : i32
    %1 = arith.extui %0 : i1 to i32
    %c0_i32_0 = arith.constant 0 : i32
    %2 = arith.cmpi ne, %1, %c0_i32_0 : i32
    scf.if %2 {
      %c0_6 = arith.constant 0 : index
      %c0_7 = arith.constant 0 : index
      %7 = vector.load %arg2[%c0_6, %c0_7] : memref<16x128xf32, #tpu.memory_space<vmem>>, vector<16x128xf32>
      %8 = math.tanh %7 : vector<16x128xf32>
      %cst_8 = arith.constant 1.000000e+00 : f32
      %9 = vector.broadcast %cst_8 : f32 to vector<16x128xf32>
      %10 = arith.truncf %9 : vector<16x128xf32> to vector<16x128xbf16>
      %c0_9 = arith.constant 0 : index
      %c0_10 = arith.constant 0 : index
      %11 = vector.load %arg5[%c0_9, %c0_10] : memref<16x640xbf16, #tpu.memory_space<vmem>>, vector<16x128xbf16>
      tpu.vector_store %arg5[%c0_9, %c0_10], %10 {strides = array<i32>} : memref<16x640xbf16, #tpu.memory_space<vmem>>, vector<16x128xbf16>,
      %cst_11 = arith.constant 4.000000e+00 : f32
      %12 = vector.broadcast %cst_11 : f32 to vector<16x128xf32>
      %13 = arith.mulf %12, %8 : vector<16x128xf32>
      %cst_12 = arith.constant 0.000000e+00 : f32
      %14 = vector.broadcast %cst_12 : f32 to vector<16x128xf32>
      %15 = arith.addf %14, %13 : vector<16x128xf32>
      %cst_13 = arith.constant 5.000000e-01 : f32
      %16 = vector.broadcast %cst_13 : f32 to vector<16x128xf32>
      %17 = arith.mulf %15, %16 : vector<16x128xf32>
      %18 = arith.truncf %17 : vector<16x128xf32> to vector<16x128xbf16>
      %c0_14 = arith.constant 0 : index
      %c128 = arith.constant 128 : index
      %19 = vector.load %arg5[%c0_14, %c128] : memref<16x640xbf16, #tpu.memory_space<vmem>>, vector<16x128xbf16>
      tpu.vector_store %arg5[%c0_14, %c128], %18 {strides = array<i32>} : memref<16x640xbf16, #tpu.memory_space<vmem>>, vector<16x128xbf16>,
      %cst_15 = arith.constant 1.875000e+00 : f32
      %20 = vector.broadcast %cst_15 : f32 to vector<16x128xf32>
      %21 = arith.mulf %20, %8 : vector<16x128xf32>
      %cst_16 = arith.constant 0.000000e+00 : f32
      %22 = vector.broadcast %cst_16 : f32 to vector<16x128xf32>
      %23 = arith.addf %21, %22 : vector<16x128xf32>
      %24 = arith.mulf %23, %17 : vector<16x128xf32>
      %cst_17 = arith.constant 7.500000e-01 : f32
      %25 = vector.broadcast %cst_17 : f32 to vector<16x128xf32>
      %26 = arith.mulf %25, %9 : vector<16x128xf32>
      %27 = arith.subf %24, %26 : vector<16x128xf32>
      %28 = arith.truncf %27 : vector<16x128xf32> to vector<16x128xbf16>
      %c0_18 = arith.constant 0 : index
      %c256 = arith.constant 256 : index
      %29 = vector.load %arg5[%c0_18, %c256] : memref<16x640xbf16, #tpu.memory_space<vmem>>, vector<16x128xbf16>
      tpu.vector_store %arg5[%c0_18, %c256], %28 {strides = array<i32>} : memref<16x640xbf16, #tpu.memory_space<vmem>>, vector<16x128xbf16>,
      %cst_19 = arith.constant 1.86666667 : f32
      %30 = vector.broadcast %cst_19 : f32 to vector<16x128xf32>
      %31 = arith.mulf %30, %8 : vector<16x128xf32>
      %cst_20 = arith.constant 0.000000e+00 : f32
      %32 = vector.broadcast %cst_20 : f32 to vector<16x128xf32>
      %33 = arith.addf %31, %32 : vector<16x128xf32>
      %34 = arith.mulf %33, %27 : vector<16x128xf32>
      %cst_21 = arith.constant 8.000000e-01 : f32
      %35 = vector.broadcast %cst_21 : f32 to vector<16x128xf32>
      %36 = arith.mulf %35, %17 : vector<16x128xf32>
      %37 = arith.subf %34, %36 : vector<16x128xf32>
      %38 = arith.truncf %37 : vector<16x128xf32> to vector<16x128xbf16>
      %c0_22 = arith.constant 0 : index
      %c384 = arith.constant 384 : index
      %39 = vector.load %arg5[%c0_22, %c384] : memref<16x640xbf16, #tpu.memory_space<vmem>>, vector<16x128xbf16>
      tpu.vector_store %arg5[%c0_22, %c384], %38 {strides = array<i32>} : memref<16x640xbf16, #tpu.memory_space<vmem>>, vector<16x128xbf16>,
      %cst_23 = arith.constant 1.875000e+00 : f32
      %40 = vector.broadcast %cst_23 : f32 to vector<16x128xf32>
      %41 = arith.mulf %40, %8 : vector<16x128xf32>
      %cst_24 = arith.constant 0.000000e+00 : f32
      %42 = vector.broadcast %cst_24 : f32 to vector<16x128xf32>
      %43 = arith.addf %41, %42 : vector<16x128xf32>
      %44 = arith.mulf %43, %37 : vector<16x128xf32>
      %cst_25 = arith.constant 0.833333313 : f32
      %45 = vector.broadcast %cst_25 : f32 to vector<16x128xf32>
      %46 = arith.mulf %45, %27 : vector<16x128xf32>
      %47 = arith.subf %44, %46 : vector<16x128xf32>
      %48 = arith.truncf %47 : vector<16x128xf32> to vector<16x128xbf16>
      %c0_26 = arith.constant 0 : index
      %c512 = arith.constant 512 : index
      %49 = vector.load %arg5[%c0_26, %c512] : memref<16x640xbf16, #tpu.memory_space<vmem>>, vector<16x128xbf16>
      tpu.vector_store %arg5[%c0_26, %c512], %48 {strides = array<i32>} : memref<16x640xbf16, #tpu.memory_space<vmem>>, vector<16x128xbf16>,
    } else {
    }
    %c0 = arith.constant 0 : index
    %c0_1 = arith.constant 0 : index
    %3 = vector.load %arg5[%c0, %c0_1] : memref<16x640xbf16, #tpu.memory_space<vmem>>, vector<16x640xbf16>
    %c0_2 = arith.constant 0 : index
    %c0_3 = arith.constant 0 : index
    %4 = vector.load %arg3[%c0_2, %c0_3] : memref<640x128xbf16, #tpu.memory_space<vmem>>, vector<640x128xbf16>
    %cst = arith.constant dense<0.000000e+00> : vector<16x128xf32>
    %5 = tpu.matmul %3, %4, %cst {dimension_numbers = #tpu.dot_dimension_numbers<[1], [0], [0], [1], [0, 0, 1, 1], [], []>} : vector<16x640xbf16>, vector<640x128xbf16>, vector<16x128xf32> -> vector<16x128xf32>
    %c0_4 = arith.constant 0 : index
    %c0_5 = arith.constant 0 : index
    %6 = vector.load %arg4[%c0_4, %c0_5] : memref<16x128xf32, #tpu.memory_space<vmem>>, vector<16x128xf32>
    tpu.vector_store %arg4[%c0_4, %c0_5], %5 {strides = array<i32>} : memref<16x128xf32, #tpu.memory_space<vmem>>, vector<16x128xf32>,
    return
  }
  func.func @transform_0(%arg0: i32, %arg1: i32) -> (i32, i32) {
    %c0_i32 = arith.constant 0 : i32
    %c0_i32_0 = arith.constant 0 : i32
    return %arg0, %c0_i32 : i32, i32
  }
  func.func @transform_1(%arg0: i32, %arg1: i32) -> (i32, i32) {
    %c0_i32 = arith.constant 0 : i32
    %c0_i32_0 = arith.constant 0 : i32
    return %c0_i32, %arg1 : i32, i32
  }
  func.func @transform_2(%arg0: i32, %arg1: i32) -> (i32, i32) {
    %c0_i32 = arith.constant 0 : i32
    return %arg0, %arg1 : i32, i32
  }
}

module attributes {stable_mosaic.version = 11 : i64} {
  func.func @_jacobikan_kernel(%arg0: i32, %arg1: i32, %arg2: memref<16x128xf32, #tpu.memory_space<vmem>>, %arg3: memref<640x128xbf16, #tpu.memory_space<vmem>>, %arg4: memref<16x128xf32, #tpu.memory_space<vmem>>, %arg5: memref<16x640xbf16, #tpu.memory_space<vmem>>) attributes {dimension_semantics = [#tpu.dimension_semantics<parallel>, #tpu.dimension_semantics<arbitrary>], iteration_bounds = array<i64: 1, 1>, scalar_prefetch = 0 : i64, scratch_operands = 1 : i64, tpu.core_type = #tpu.core_type<tc>, window_params = [{transform_indices = @transform_0, window_bounds = array<i64: 16, 128>}, {transform_indices = @transform_1, window_bounds = array<i64: 640, 128>}, {transform_indices = @transform_2, window_bounds = array<i64: 16, 128>}]} {
    %c0_i32 = arith.constant 0 : i32
    %0 = arith.cmpi eq, %arg1, %c0_i32 : i32
    %1 = arith.extui %0 : i1 to i32
    %c0_i32_0 = arith.constant 0 : i32
    %2 = arith.cmpi ne, %1, %c0_i32_0 : i32
    scf.if %2 {
      %c0_6 = arith.constant 0 : index
      %c0_7 = arith.constant 0 : index
      %7 = vector.load %arg2[%c0_6, %c0_7] : memref<16x128xf32, #tpu.memory_space<vmem>>, vector<16x128xf32>
      %8 = math.tanh %7 : vector<16x128xf32>
      %cst_8 = arith.constant 1.000000e+00 : f32
      %9 = vector.broadcast %cst_8 : f32 to vector<16x128xf32>
      %10 = arith.truncf %9 : vector<16x128xf32> to vector<16x128xbf16>
      %c0_9 = arith.constant 0 : index
      %c0_10 = arith.constant 0 : index
      %11 = vector.load %arg5[%c0_9, %c0_10] : memref<16x640xbf16, #tpu.memory_space<vmem>>, vector<16x128xbf16>
      tpu.vector_store %arg5[%c0_9, %c0_10], %10 {strides = array<i32>} : memref<16x640xbf16, #tpu.memory_space<vmem>>, vector<16x128xbf16>,
      %cst_11 = arith.constant 4.000000e+00 : f32
      %12 = vector.broadcast %cst_11 : f32 to vector<16x128xf32>
      %13 = arith.mulf %12, %8 : vector<16x128xf32>
      %cst_12 = arith.constant 0.000000e+00 : f32
      %14 = vector.broadcast %cst_12 : f32 to vector<16x128xf32>
      %15 = arith.addf %14, %13 : vector<16x128xf32>
      %cst_13 = arith.constant 5.000000e-01 : f32
      %16 = vector.broadcast %cst_13 : f32 to vector<16x128xf32>
      %17 = arith.mulf %15, %16 : vector<16x128xf32>
      %18 = arith.truncf %17 : vector<16x128xf32> to vector<16x128xbf16>
      %c0_14 = arith.constant 0 : index
      %c128 = arith.constant 128 : index
      %19 = vector.load %arg5[%c0_14, %c128] : memref<16x640xbf16, #tpu.memory_space<vmem>>, vector<16x128xbf16>
      tpu.vector_store %arg5[%c0_14, %c128], %18 {strides = array<i32>} : memref<16x640xbf16, #tpu.memory_space<vmem>>, vector<16x128xbf16>,
      %cst_15 = arith.constant 1.875000e+00 : f32
      %20 = vector.broadcast %cst_15 : f32 to vector<16x128xf32>
      %21 = arith.mulf %20, %8 : vector<16x128xf32>
      %cst_16 = arith.constant 0.000000e+00 : f32
      %22 = vector.broadcast %cst_16 : f32 to vector<16x128xf32>
      %23 = arith.addf %21, %22 : vector<16x128xf32>
      %24 = arith.mulf %23, %17 : vector<16x128xf32>
      %cst_17 = arith.constant 7.500000e-01 : f32
      %25 = vector.broadcast %cst_17 : f32 to vector<16x128xf32>
      %26 = arith.mulf %25, %9 : vector<16x128xf32>
      %27 = arith.subf %24, %26 : vector<16x128xf32>
      %28 = arith.truncf %27 : vector<16x128xf32> to vector<16x128xbf16>
      %c0_18 = arith.constant 0 : index
      %c256 = arith.constant 256 : index
      %29 = vector.load %arg5[%c0_18, %c256] : memref<16x640xbf16, #tpu.memory_space<vmem>>, vector<16x128xbf16>
      tpu.vector_store %arg5[%c0_18, %c256], %28 {strides = array<i32>} : memref<16x640xbf16, #tpu.memory_space<vmem>>, vector<16x128xbf16>,
      %cst_19 = arith.constant 1.86666667 : f32
      %30 = vector.broadcast %cst_19 : f32 to vector<16x128xf32>
      %31 = arith.mulf %30, %8 : vector<16x128xf32>
      %cst_20 = arith.constant 0.000000e+00 : f32
      %32 = vector.broadcast %cst_20 : f32 to vector<16x128xf32>
      %33 = arith.addf %31, %32 : vector<16x128xf32>
      %34 = arith.mulf %33, %27 : vector<16x128xf32>
      %cst_21 = arith.constant 8.000000e-01 : f32
      %35 = vector.broadcast %cst_21 : f32 to vector<16x128xf32>
      %36 = arith.mulf %35, %17 : vector<16x128xf32>
      %37 = arith.subf %34, %36 : vector<16x128xf32>
      %38 = arith.truncf %37 : vector<16x128xf32> to vector<16x128xbf16>
      %c0_22 = arith.constant 0 : index
      %c384 = arith.constant 384 : index
      %39 = vector.load %arg5[%c0_22, %c384] : memref<16x640xbf16, #tpu.memory_space<vmem>>, vector<16x128xbf16>
      tpu.vector_store %arg5[%c0_22, %c384], %38 {strides = array<i32>} : memref<16x640xbf16, #tpu.memory_space<vmem>>, vector<16x128xbf16>,
      %cst_23 = arith.constant 1.875000e+00 : f32
      %40 = vector.broadcast %cst_23 : f32 to vector<16x128xf32>
      %41 = arith.mulf %40, %8 : vector<16x128xf32>
      %cst_24 = arith.constant 0.000000e+00 : f32
      %42 = vector.broadcast %cst_24 : f32 to vector<16x128xf32>
      %43 = arith.addf %41, %42 : vector<16x128xf32>
      %44 = arith.mulf %43, %37 : vector<16x128xf32>
      %cst_25 = arith.constant 0.833333313 : f32
      %45 = vector.broadcast %cst_25 : f32 to vector<16x128xf32>
      %46 = arith.mulf %45, %27 : vector<16x128xf32>
      %47 = arith.subf %44, %46 : vector<16x128xf32>
      %48 = arith.truncf %47 : vector<16x128xf32> to vector<16x128xbf16>
      %c0_26 = arith.constant 0 : index
      %c512 = arith.constant 512 : index
      %49 = vector.load %arg5[%c0_26, %c512] : memref<16x640xbf16, #tpu.memory_space<vmem>>, vector<16x128xbf16>
      tpu.vector_store %arg5[%c0_26, %c512], %48 {strides = array<i32>} : memref<16x640xbf16, #tpu.memory_space<vmem>>, vector<16x128xbf16>,
    } else {
    }
    %c0 = arith.constant 0 : index
    %c0_1 = arith.constant 0 : index
    %3 = vector.load %arg5[%c0, %c0_1] : memref<16x640xbf16, #tpu.memory_space<vmem>>, vector<16x640xbf16>
    %c0_2 = arith.constant 0 : index
    %c0_3 = arith.constant 0 : index
    %4 = vector.load %arg3[%c0_2, %c0_3] : memref<640x128xbf16, #tpu.memory_space<vmem>>, vector<640x128xbf16>
    %cst = arith.constant dense<0.000000e+00> : vector<16x128xf32>
    %5 = tpu.matmul %3, %4, %cst {dimension_numbers = #tpu.dot_dimension_numbers<[1], [0], [0], [1], [0, 0, 1, 1], [], []>} : vector<16x640xbf16>, vector<640x128xbf16>, vector<16x128xf32> -> vector<16x128xf32>
    %c0_4 = arith.constant 0 : index
    %c0_5 = arith.constant 0 : index
    %6 = vector.load %arg4[%c0_4, %c0_5] : memref<16x128xf32, #tpu.memory_space<vmem>>, vector<16x128xf32>
    tpu.vector_store %arg4[%c0_4, %c0_5], %5 {strides = array<i32>} : memref<16x128xf32, #tpu.memory_space<vmem>>, vector<16x128xf32>,
    return
  }
  func.func @transform_0(%arg0: i32, %arg1: i32) -> (i32, i32) {
    %c0_i32 = arith.constant 0 : i32
    %c0_i32_0 = arith.constant 0 : i32
    return %arg0, %c0_i32 : i32, i32
  }
  func.func @transform_1(%arg0: i32, %arg1: i32) -> (i32, i32) {
    %c0_i32 = arith.constant 0 : i32
    %c0_i32_0 = arith.constant 0 : i32
    return %c0_i32, %arg1 : i32, i32
  }
  func.func @transform_2(%arg0: i32, %arg1: i32) -> (i32, i32) {
    %c0_i32 = arith.constant 0 : i32
    return %arg0, %arg1 : i32, i32
  }
}

</mosaic_0001>

<llo_original>
// kernel: tpu_custom_call.1
$region0: #{tpu_custom_call.1}
  #allocation0 [shape = 'u32[]', space=smem, size = 0x4, offset = 0x4, fixed_abs, tag = 'smem constant byte address 0x4 - core index']
  #allocation1 [shape = 'u32[144,128]{1,0:T(1,128)}', space=vmem, size = 0x12000, scoped, tag = 'internal scratch']
  #allocation2 [shape = 'bf16[16,640]{1,0:T(16,128)(2,1)}', space=vmem, size = 0x5000, scoped, tag = 'scratch operand']
  %s0 = inlined_call_operand.hbm [shape: f32[16,128], index: 0, kind: input, shape index: {}]
  %s1 = inlined_call_operand.hbm [shape: bf16[640,128], index: 1, kind: input, shape index: {}]
  %s2 = inlined_call_operand.hbm [shape: f32[16,128], index: 2, kind: output, shape index: {}]
  %s3 = sld [smem:[#allocation0]]
  $region30: #{tpu_custom_call.1} parent=0
    _
  %s5 = ssub.s32 1, %s3
  %s6 = scalar_select 0, %s5, %s3
  $region1: #{tpu_custom_call.1} parent=0
    #allocation3 [shape = 'u8[8192]{0}', space=vmem, size = 0x2000, scoped, tag = 'input window, operand 0, single buffered']
    #allocation4 [shape = 's32[1]{0}', space=sflag, size = 0x4, scoped, tag = 'scoped memory for tpu_custom_call.1']
    #allocation5 [shape = 's32[1]{0}', space=sflag, size = 0x4, scoped, tag = 'scoped memory for tpu_custom_call.1']
    #allocation6 [shape = 'u8[163840]{0}', space=vmem, size = 0x28000, scoped, tag = 'input window, operand 1, single buffered']
    #allocation7 [shape = 's32[1]{0}', space=sflag, size = 0x4, scoped, tag = 'scoped memory for tpu_custom_call.1']
    #allocation8 [shape = 'u8[8192]{0}', space=vmem, size = 0x2000, scoped, tag = 'output window, operand 0, single buffered']
    %7 = vsyncpa [#allocation4], 0
    %8 = vsyncpa [#allocation7], 0
    %9 = vsyncpa [#allocation5], 0
    // Predicated region
    $region2: #{tpu_custom_call.1} parent=1 // pred_check
      _
    $region3: #{tpu_custom_call.1} parent=1 // pred_check_branch
      %11 = sbr.rel (0) target = $region5
    $region4: #{tpu_custom_call.1} parent=1 // pred_region
      %s13 = ssub.s32 256, 256
      %14 = vsyncadd [#allocation4], %s13
      %s15 = sshll.u32 [#allocation3], 4
      %s16 = int_to_ptr.vmem [resolvable:$true] %s15
      %21 = dma.hbm_to_vmem [thread:$0]  %s0, 256, %s16, [#allocation4], 128, 128, 8
    $region5: #{tpu_custom_call.1} parent=1 // pred_fallthru
      _
    // Predicated region
    $region6: #{tpu_custom_call.1} parent=1 // pred_check
      _
    $region7: #{tpu_custom_call.1} parent=1 // pred_check_branch
      %23 = sbr.rel (0) target = $region9
    $region8: #{tpu_custom_call.1} parent=1 // pred_region
      %s25 = ssub.s32 5120, 5120
      %26 = vsyncadd [#allocation7], %s25
      %s27 = sshll.u32 [#allocation6], 4
      %s28 = int_to_ptr.vmem [resolvable:$true] %s27
      %33 = dma.hbm_to_vmem [thread:$0]  %s1, 5120, %s28, [#allocation7], 64, 64, 4
    $region9: #{tpu_custom_call.1} parent=1 // pred_fallthru
      _
    // Predicated region
    $region10: #{tpu_custom_call.1} parent=1 // pred_check
      _
    $region11: #{tpu_custom_call.1} parent=1 // pred_check_branch
      %35 = sbr.rel (0) target = $region13
    $region12: #{tpu_custom_call.1} parent=1 // pred_region
      %36 = dma.done [#allocation4], 256
    $region13: #{tpu_custom_call.1} parent=1 // pred_fallthru
      _
    // Predicated region
    $region14: #{tpu_custom_call.1} parent=1 // pred_check
      _
    $region15: #{tpu_custom_call.1} parent=1 // pred_check_branch
      %38 = sbr.rel (0) target = $region17
    $region16: #{tpu_custom_call.1} parent=1 // pred_region
      %39 = dma.done [#allocation7], 5120
    $region17: #{tpu_custom_call.1} parent=1 // pred_fallthru
      _
    %p42 = scmp.eq.s32.totalorder 0, 0
    // Predicated region
    $region18: #{tpu_custom_call.1} parent=1 // pred_check
      %p43 = pneg %p42
    $region19: #{tpu_custom_call.1} parent=1 // pred_check_branch
      %45 = sbr.rel (%p43) target = $region21
    $region20: #{tpu_custom_call.1} parent=1 // pred_region
      %v46 = vld [vmem:[#allocation3] sm:$0xff]
      %v47 = vld [vmem:[#allocation3 + $0x8] sm:$0xff]
      %v48 = vtanh.pop %v46
      %v49 = vtanh.pop %v47
      %50 = vst [vmem:[#allocation2] sm:$0xff] 1065369472
      %v51 = vmul.f32 %v48, 4.0
      %v52 = vmul.f32 %v49, 4.0
      %v53 = vadd.f32 %v51, 0.0
      %v54 = vadd.f32 %v52, 0.0
      %v55 = vmul.f32 %v53, 0.5
      %v56 = vmul.f32 %v54, 0.5
      %v57 = vpack.c.bf16 %v56, %v55
      %58 = vst [vmem:[#allocation2 + $0x8] sm:$0xff] %v57
      %v59 = vmul.f32 %v48, 1.875
      %v60 = vmul.f32 %v49, 1.875
      %v61 = vadd.f32 %v59, 0.0
      %v62 = vadd.f32 %v60, 0.0
      %v63 = vmul.f32 %v61, %v55
      %v64 = vmul.f32 %v62, %v56
      %v65 = vsub.f32 %v63, 0.75
      %v66 = vsub.f32 %v64, 0.75
      %v67 = vpack.c.bf16 %v66, %v65
      %68 = vst [vmem:[#allocation2 + $0x10] sm:$0xff] %v67
      %v69 = vmul.f32 %v48, 1.8666667
      %v70 = vmul.f32 %v49, 1.8666667
      %v71 = vadd.f32 %v69, 0.0
      %v72 = vadd.f32 %v70, 0.0
      %v73 = vmul.f32 %v71, %v65
      %v74 = vmul.f32 %v72, %v66
      %v75 = vmul.f32 %v55, 0.8
      %v76 = vmul.f32 %v56, 0.8
      %v77 = vsub.f32 %v73, %v75
      %v78 = vsub.f32 %v74, %v76
      %v79 = vpack.c.bf16 %v78, %v77
      %80 = vst [vmem:[#allocation2 + $0x18] sm:$0xff] %v79
      %v81 = vmul.f32 %v61, %v77
      %v82 = vmul.f32 %v62, %v78
      %v83 = vmul.f32 %v65, 0.8333333
      %v84 = vmul.f32 %v66, 0.8333333
      %v85 = vsub.f32 %v81, %v83
      %v86 = vsub.f32 %v82, %v84
      %v87 = vpack.c.bf16 %v86, %v85
      %88 = vst [vmem:[#allocation2 + $0x20] sm:$0xff] %v87
    $region21: #{tpu_custom_call.1} parent=1 // pred_fallthru
      _
    %v89 = vld [vmem:[#allocation2] sm:$0xff]
    %v90 = vld [vmem:[#allocation2 + $0x8] sm:$0xff]
    %v91 = vld [vmem:[#allocation2 + $0x10] sm:$0xff]
    %v92 = vld [vmem:[#allocation2 + $0x18] sm:$0xff]
    %v93 = vld [vmem:[#allocation2 + $0x20] sm:$0xff]
    %v94 = vld [vmem:[#allocation6] sm:$0xf]
    %v95 = vld [vmem:[#allocation6 + $0x4] sm:$0xf]
    %v96 = vld [vmem:[#allocation6 + $0x8] sm:$0xf]
    %v97 = vld [vmem:[#allocation6 + $0xc] sm:$0xf]
    %v98 = vld [vmem:[#allocation6 + $0x10] sm:$0xf]
    %v99 = vld [vmem:[#allocation6 + $0x14] sm:$0xf]
    %v100 = vld [vmem:[#allocation6 + $0x18] sm:$0xf]
    %v101 = vld [vmem:[#allocation6 + $0x1c] sm:$0xf]
    %v102 = vld [vmem:[#allocation6 + $0x20] sm:$0xf]
    %v103 = vld [vmem:[#allocation6 + $0x24] sm:$0xf]
    %v104 = vld [vmem:[#allocation6 + $0x28] sm:$0xf]
    %v105 = vld [vmem:[#allocation6 + $0x2c] sm:$0xf]
    %v106 = vld [vmem:[#allocation6 + $0x30] sm:$0xf]
    %v107 = vld [vmem:[#allocation6 + $0x34] sm:$0xf]
    %v108 = vld [vmem:[#allocation6 + $0x38] sm:$0xf]
    %v109 = vld [vmem:[#allocation6 + $0x3c] sm:$0xf]
    %v110 = vld [vmem:[#allocation6 + $0x40] sm:$0xf]
    %v111 = vld [vmem:[#allocation6 + $0x44] sm:$0xf]
    %v112 = vld [vmem:[#allocation6 + $0x48] sm:$0xf]
    %v113 = vld [vmem:[#allocation6 + $0x4c] sm:$0xf]
    %v114 = vld [vmem:[#allocation6 + $0x50] sm:$0xf]
    %v115 = vld [vmem:[#allocation6 + $0x54] sm:$0xf]
    %v116 = vld [vmem:[#allocation6 + $0x58] sm:$0xf]
    %v117 = vld [vmem:[#allocation6 + $0x5c] sm:$0xf]
    %v118 = vld [vmem:[#allocation6 + $0x60] sm:$0xf]
    %v119 = vld [vmem:[#allocation6 + $0x64] sm:$0xf]
    %v120 = vld [vmem:[#allocation6 + $0x68] sm:$0xf]
    %v121 = vld [vmem:[#allocation6 + $0x6c] sm:$0xf]
    %v122 = vld [vmem:[#allocation6 + $0x70] sm:$0xf]
    %v123 = vld [vmem:[#allocation6 + $0x74] sm:$0xf]
    %v124 = vld [vmem:[#allocation6 + $0x78] sm:$0xf]
    %v125 = vld [vmem:[#allocation6 + $0x7c] sm:$0xf]
    %v126 = vld [vmem:[#allocation6 + $0x80] sm:$0xf]
    %v127 = vld [vmem:[#allocation6 + $0x84] sm:$0xf]
    %v128 = vld [vmem:[#allocation6 + $0x88] sm:$0xf]
    %v129 = vld [vmem:[#allocation6 + $0x8c] sm:$0xf]
    %v130 = vld [vmem:[#allocation6 + $0x90] sm:$0xf]
    %v131 = vld [vmem:[#allocation6 + $0x94] sm:$0xf]
    %v132 = vld [vmem:[#allocation6 + $0x98] sm:$0xf]
    %v133 = vld [vmem:[#allocation6 + $0x9c] sm:$0xf]
    %v134 = vld [vmem:[#allocation6 + $0xa0] sm:$0xf]
    %v135 = vld [vmem:[#allocation6 + $0xa4] sm:$0xf]
    %v136 = vld [vmem:[#allocation6 + $0xa8] sm:$0xf]
    %v137 = vld [vmem:[#allocation6 + $0xac] sm:$0xf]
    %v138 = vld [vmem:[#allocation6 + $0xb0] sm:$0xf]
    %v139 = vld [vmem:[#allocation6 + $0xb4] sm:$0xf]
    %v140 = vld [vmem:[#allocation6 + $0xb8] sm:$0xf]
    %v141 = vld [vmem:[#allocation6 + $0xbc] sm:$0xf]
    %v142 = vld [vmem:[#allocation6 + $0xc0] sm:$0xf]
    %v143 = vld [vmem:[#allocation6 + $0xc4] sm:$0xf]
    %v144 = vld [vmem:[#allocation6 + $0xc8] sm:$0xf]
    %v145 = vld [vmem:[#allocation6 + $0xcc] sm:$0xf]
    %v146 = vld [vmem:[#allocation6 + $0xd0] sm:$0xf]
    %v147 = vld [vmem:[#allocation6 + $0xd4] sm:$0xf]
    %v148 = vld [vmem:[#allocation6 + $0xd8] sm:$0xf]
    %v149 = vld [vmem:[#allocation6 + $0xdc] sm:$0xf]
    %v150 = vld [vmem:[#allocation6 + $0xe0] sm:$0xf]
    %v151 = vld [vmem:[#allocation6 + $0xe4] sm:$0xf]
    %v152 = vld [vmem:[#allocation6 + $0xe8] sm:$0xf]
    %v153 = vld [vmem:[#allocation6 + $0xec] sm:$0xf]
    %v154 = vld [vmem:[#allocation6 + $0xf0] sm:$0xf]
    %v155 = vld [vmem:[#allocation6 + $0xf4] sm:$0xf]
    %v156 = vld [vmem:[#allocation6 + $0xf8] sm:$0xf]
    %v157 = vld [vmem:[#allocation6 + $0xfc] sm:$0xf]
    %v158 = vld [vmem:[#allocation6 + $0x100] sm:$0xf]
    %v159 = vld [vmem:[#allocation6 + $0x104] sm:$0xf]
    %v160 = vld [vmem:[#allocation6 + $0x108] sm:$0xf]
    %v161 = vld [vmem:[#allocation6 + $0x10c] sm:$0xf]
    %v162 = vld [vmem:[#allocation6 + $0x110] sm:$0xf]
    %v163 = vld [vmem:[#allocation6 + $0x114] sm:$0xf]
    %v164 = vld [vmem:[#allocation6 + $0x118] sm:$0xf]
    %v165 = vld [vmem:[#allocation6 + $0x11c] sm:$0xf]
    %v166 = vld [vmem:[#allocation6 + $0x120] sm:$0xf]
    %v167 = vld [vmem:[#allocation6 + $0x124] sm:$0xf]
    %v168 = vld [vmem:[#allocation6 + $0x128] sm:$0xf]
    %v169 = vld [vmem:[#allocation6 + $0x12c] sm:$0xf]
    %v170 = vld [vmem:[#allocation6 + $0x130] sm:$0xf]
    %v171 = vld [vmem:[#allocation6 + $0x134] sm:$0xf]
    %v172 = vld [vmem:[#allocation6 + $0x138] sm:$0xf]
    %v173 = vld [vmem:[#allocation6 + $0x13c] sm:$0xf]
    %v254 = vunpack.c.l.b16 %v94
    %v255 = vunpack.c.l.b16 %v95
    %v256 = vunpack.c.l.b16 %v96
    %v257 = vunpack.c.l.b16 %v97
    %v258 = vunpack.c.l.b16 %v98
    %v259 = vunpack.c.l.b16 %v99
    %v260 = vunpack.c.l.b16 %v100
    %v261 = vunpack.c.l.b16 %v101
    %v262 = vunpack.c.l.b16 %v102
    %v263 = vunpack.c.l.b16 %v103
    %v264 = vunpack.c.l.b16 %v104
    %v265 = vunpack.c.l.b16 %v105
    %v266 = vunpack.c.l.b16 %v106
    %v267 = vunpack.c.l.b16 %v107
    %v268 = vunpack.c.l.b16 %v108
    %v269 = vunpack.c.l.b16 %v109
    %v270 = vunpack.c.l.b16 %v110
    %v271 = vunpack.c.l.b16 %v111
    %v272 = vunpack.c.l.b16 %v112
    %v273 = vunpack.c.l.b16 %v113
    %v274 = vunpack.c.l.b16 %v114
    %v275 = vunpack.c.l.b16 %v115
    %v276 = vunpack.c.l.b16 %v116
    %v277 = vunpack.c.l.b16 %v117
    %v278 = vunpack.c.l.b16 %v118
    %v279 = vunpack.c.l.b16 %v119
    %v280 = vunpack.c.l.b16 %v120
    %v281 = vunpack.c.l.b16 %v121
    %v282 = vunpack.c.l.b16 %v122
    %v283 = vunpack.c.l.b16 %v123
    %v284 = vunpack.c.l.b16 %v124
    %v285 = vunpack.c.l.b16 %v125
    %v286 = vunpack.c.l.b16 %v126
    %v287 = vunpack.c.l.b16 %v127
    %v288 = vunpack.c.l.b16 %v128
    %v289 = vunpack.c.l.b16 %v129
    %v290 = vunpack.c.l.b16 %v130
    %v291 = vunpack.c.l.b16 %v131
    %v292 = vunpack.c.l.b16 %v132
    %v293 = vunpack.c.l.b16 %v133
    %v294 = vunpack.c.l.b16 %v134
    %v295 = vunpack.c.l.b16 %v135
    %v296 = vunpack.c.l.b16 %v136
    %v297 = vunpack.c.l.b16 %v137
    %v298 = vunpack.c.l.b16 %v138
    %v299 = vunpack.c.l.b16 %v139
    %v300 = vunpack.c.l.b16 %v140
    %v301 = vunpack.c.l.b16 %v141
    %v302 = vunpack.c.l.b16 %v142
    %v303 = vunpack.c.l.b16 %v143
    %v304 = vunpack.c.l.b16 %v144
    %v305 = vunpack.c.l.b16 %v145
    %v306 = vunpack.c.l.b16 %v146
    %v307 = vunpack.c.l.b16 %v147
    %v308 = vunpack.c.l.b16 %v148
    %v309 = vunpack.c.l.b16 %v149
    %v310 = vunpack.c.l.b16 %v150
    %v311 = vunpack.c.l.b16 %v151
    %v312 = vunpack.c.l.b16 %v152
    %v313 = vunpack.c.l.b16 %v153
    %v314 = vunpack.c.l.b16 %v154
    %v315 = vunpack.c.l.b16 %v155
    %v316 = vunpack.c.l.b16 %v156
    %v317 = vunpack.c.l.b16 %v157
    %v318 = vunpack.c.l.b16 %v158
    %v319 = vunpack.c.l.b16 %v159
    %v320 = vunpack.c.l.b16 %v160
    %v321 = vunpack.c.l.b16 %v161
    %v322 = vunpack.c.l.b16 %v162
    %v323 = vunpack.c.l.b16 %v163
    %v324 = vunpack.c.l.b16 %v164
    %v325 = vunpack.c.l.b16 %v165
    %v326 = vunpack.c.l.b16 %v166
    %v327 = vunpack.c.l.b16 %v167
    %v328 = vunpack.c.l.b16 %v168
    %v329 = vunpack.c.l.b16 %v169
    %v330 = vunpack.c.l.b16 %v170
    %v331 = vunpack.c.l.b16 %v171
    %v332 = vunpack.c.l.b16 %v172
    %v333 = vunpack.c.l.b16 %v173
    %v334 = vpack.c.b16 %v255, %v254
    %v335 = vpack.c.b16 %v257, %v256
    %v336 = vpack.c.b16 %v259, %v258
    %v337 = vpack.c.b16 %v261, %v260
    %v338 = vpack.c.b16 %v263, %v262
    %v339 = vpack.c.b16 %v265, %v264
    %v340 = vpack.c.b16 %v267, %v266
    %v341 = vpack.c.b16 %v269, %v268
    %v342 = vpack.c.b16 %v271, %v270
    %v343 = vpack.c.b16 %v273, %v272
    %v344 = vpack.c.b16 %v275, %v274
    %v345 = vpack.c.b16 %v277, %v276
    %v346 = vpack.c.b16 %v279, %v278
    %v347 = vpack.c.b16 %v281, %v280
    %v348 = vpack.c.b16 %v283, %v282
    %v349 = vpack.c.b16 %v285, %v284
    %v350 = vpack.c.b16 %v287, %v286
    %v351 = vpack.c.b16 %v289, %v288
    %v352 = vpack.c.b16 %v291, %v290
    %v353 = vpack.c.b16 %v293, %v292
    %v354 = vpack.c.b16 %v295, %v294
    %v355 = vpack.c.b16 %v297, %v296
    %v356 = vpack.c.b16 %v299, %v298
    %v357 = vpack.c.b16 %v301, %v300
    %v358 = vpack.c.b16 %v303, %v302
    %v359 = vpack.c.b16 %v305, %v304
    %v360 = vpack.c.b16 %v307, %v306
    %v361 = vpack.c.b16 %v309, %v308
    %v362 = vpack.c.b16 %v311, %v310
    %v363 = vpack.c.b16 %v313, %v312
    %v364 = vpack.c.b16 %v315, %v314
    %v365 = vpack.c.b16 %v317, %v316
    %v366 = vpack.c.b16 %v319, %v318
    %v367 = vpack.c.b16 %v321, %v320
    %v368 = vpack.c.b16 %v323, %v322
    %v369 = vpack.c.b16 %v325, %v324
    %v370 = vpack.c.b16 %v327, %v326
    %v371 = vpack.c.b16 %v329, %v328
    %v372 = vpack.c.b16 %v331, %v330
    %v373 = vpack.c.b16 %v333, %v332
    %414 = vmatprep.subr.bf16.mxu0 0
    %415 = vmatpush1.bf16.msra.mxu0 %v334
    %416 = vmatprep.subr.bf16.mxu0 0
    %417 = vmatpush1.bf16.msra.mxu0 %v335
    %418 = vmatprep.subr.bf16.mxu0 0
    %419 = vmatpush1.bf16.msra.mxu0 %v336
    %420 = vmatprep.subr.bf16.mxu0 0
    %421 = vmatpush1.bf16.msra.mxu0 %v337
    %422 = vmatprep.subr.bf16.mxu0 0
    %423 = vmatpush1.bf16.msra.mxu0 %v338
    %424 = vmatprep.subr.bf16.mxu0 0
    %425 = vmatpush1.bf16.msra.mxu0 %v339
    %426 = vmatprep.subr.bf16.mxu0 0
    %427 = vmatpush1.bf16.msra.mxu0 %v340
    %428 = vmatprep.subr.bf16.mxu0 0
    %429 = vmatpush1.bf16.msra.mxu0 %v341
    %430 = vmatprep.subr.bf16.mxu0 0
    %431 = vmatpush1.bf16.msra.mxu0 %v342
    %432 = vmatprep.subr.bf16.mxu0 0
    %433 = vmatpush1.bf16.msra.mxu0 %v343
    %434 = vmatprep.subr.bf16.mxu0 0
    %435 = vmatpush1.bf16.msra.mxu0 %v344
    %436 = vmatprep.subr.bf16.mxu0 0
    %437 = vmatpush1.bf16.msra.mxu0 %v345
    %438 = vmatprep.subr.bf16.mxu0 0
    %439 = vmatpush1.bf16.msra.mxu0 %v346
    %440 = vmatprep.subr.bf16.mxu0 0
    %441 = vmatpush1.bf16.msra.mxu0 %v347
    %442 = vmatprep.subr.bf16.mxu0 0
    %443 = vmatpush1.bf16.msra.mxu0 %v348
    %444 = vmatprep.subr.bf16.mxu0 0
    %445 = vmatpush1.bf16.msra.mxu0 %v349
    %446 = vmatprep.mubr.bf16.mxu0 %v90
    %447 = vmatmul.mubr.bf16.gmra.mrb[0].mxu0 %v89
    %v448 = vpop.f32.mrb[0].mxu0
    %v449 = vadd.f32 0.0, %v448
    %v450 = vpop.f32.mrb[0].mxu0
    %v451 = vpop.f32.mrb[0].mxu0
    %v452 = vadd.f32 0.0, %v451
    %v453 = vpop.f32.mrb[0].mxu0
    %454 = vdwg.mxu0
    %455 = vmatprep.subr.bf16.mxu0 0
    %456 = vmatpush1.bf16.msra.mxu0 %v350
    %457 = vmatprep.subr.bf16.mxu0 0
    %458 = vmatpush1.bf16.msra.mxu0 %v351
    %459 = vmatprep.subr.bf16.mxu0 0
    %460 = vmatpush1.bf16.msra.mxu0 %v352
    %461 = vmatprep.subr.bf16.mxu0 0
    %462 = vmatpush1.bf16.msra.mxu0 %v353
    %463 = vmatprep.subr.bf16.mxu0 0
    %464 = vmatpush1.bf16.msra.mxu0 %v354
    %465 = vmatprep.subr.bf16.mxu0 0
    %466 = vmatpush1.bf16.msra.mxu0 %v355
    %467 = vmatprep.subr.bf16.mxu0 0
    %468 = vmatpush1.bf16.msra.mxu0 %v356
    %469 = vmatprep.subr.bf16.mxu0 0
    %470 = vmatpush1.bf16.msra.mxu0 %v357
    %471 = vmatprep.subr.bf16.mxu0 0
    %472 = vmatpush1.bf16.msra.mxu0 %v358
    %473 = vmatprep.subr.bf16.mxu0 0
    %474 = vmatpush1.bf16.msra.mxu0 %v359
    %475 = vmatprep.subr.bf16.mxu0 0
    %476 = vmatpush1.bf16.msra.mxu0 %v360
    %477 = vmatprep.subr.bf16.mxu0 0
    %478 = vmatpush1.bf16.msra.mxu0 %v361
    %479 = vmatprep.subr.bf16.mxu0 0
    %480 = vmatpush1.bf16.msra.mxu0 %v362
    %481 = vmatprep.subr.bf16.mxu0 0
    %482 = vmatpush1.bf16.msra.mxu0 %v363
    %483 = vmatprep.subr.bf16.mxu0 0
    %484 = vmatpush1.bf16.msra.mxu0 %v364
    %485 = vmatprep.subr.bf16.mxu0 0
    %486 = vmatpush1.bf16.msra.mxu0 %v365
    %487 = vmatprep.mubr.bf16.mxu0 %v92
    %488 = vmatmul.mubr.bf16.gmra.mrb[0].mxu0 %v91
    %v489 = vpop.f32.mrb[0].mxu0
    %v490 = vadd.f32 %v449, %v489
    %v491 = vpop.f32.mrb[0].mxu0
    %v492 = vpop.f32.mrb[0].mxu0
    %v493 = vadd.f32 %v452, %v492
    %v494 = vpop.f32.mrb[0].mxu0
    %495 = vdwg.mxu0
    %496 = vmatprep.subr.bf16.mxu0 0
    %497 = vmatpush1.bf16.msra.mxu0 %v366
    %498 = vmatprep.subr.bf16.mxu0 0
    %499 = vmatpush1.bf16.msra.mxu0 %v367
    %500 = vmatprep.subr.bf16.mxu0 0
    %501 = vmatpush1.bf16.msra.mxu0 %v368
    %502 = vmatprep.subr.bf16.mxu0 0
    %503 = vmatpush1.bf16.msra.mxu0 %v369
    %504 = vmatprep.subr.bf16.mxu0 0
    %505 = vmatpush1.bf16.msra.mxu0 %v370
    %506 = vmatprep.subr.bf16.mxu0 0
    %507 = vmatpush1.bf16.msra.mxu0 %v371
    %508 = vmatprep.subr.bf16.mxu0 0
    %509 = vmatpush1.bf16.msra.mxu0 %v372
    %510 = vmatprep.subr.bf16.mxu0 0
    %511 = vmatpush1.bf16.msra.mxu0 %v373
    %512 = vmatprep.subr.bf16.mxu0 0
    %513 = vmatpush1.bf16.msra.mxu0 0
    %514 = vmatprep.subr.bf16.mxu0 0
    %515 = vmatpush1.bf16.msra.mxu0 0
    %516 = vmatprep.subr.bf16.mxu0 0
    %517 = vmatpush1.bf16.msra.mxu0 0
    %518 = vmatprep.subr.bf16.mxu0 0
    %519 = vmatpush1.bf16.msra.mxu0 0
    %520 = vmatprep.subr.bf16.mxu0 0
    %521 = vmatpush1.bf16.msra.mxu0 0
    %522 = vmatprep.subr.bf16.mxu0 0
    %523 = vmatpush1.bf16.msra.mxu0 0
    %524 = vmatprep.subr.bf16.mxu0 0
    %525 = vmatpush1.bf16.msra.mxu0 0
    %526 = vmatprep.subr.bf16.mxu0 0
    %527 = vmatpush1.bf16.msra.mxu0 0
    %528 = vmatprep.mubr.bf16.mxu0 0
    %529 = vmatmul.mubr.bf16.gmra.mrb[0].mxu0 %v93
    %v530 = vpop.f32.mrb[0].mxu0
    %v531 = vadd.f32 %v490, %v530
    %v532 = vpop.f32.mrb[0].mxu0
    %v533 = vpop.f32.mrb[0].mxu0
    %v534 = vadd.f32 %v493, %v533
    %v535 = vpop.f32.mrb[0].mxu0
    %536 = vdwg.mxu0
    %537 = vst [vmem:[#allocation8] sm:$0xff] %v531
    %538 = vst [vmem:[#allocation8 + $0x8] sm:$0xff] %v534
    // Predicated region
    $region22: #{tpu_custom_call.1} parent=1 // pred_check
      _
    $region23: #{tpu_custom_call.1} parent=1 // pred_check_branch
      %540 = sbr.rel (0) target = $region25
    $region24: #{tpu_custom_call.1} parent=1 // pred_region
      %s542 = ssub.s32 256, 256
      %543 = vsyncadd [#allocation5], %s542
      %s544 = sshll.u32 [#allocation8], 4
      %s545 = int_to_ptr.vmem [resolvable:$true] %s544
      %550 = dma.vmem_to_hbm [thread:$0]  %s545, 256, %s2, [#allocation5], 128, 128, 8
    $region25: #{tpu_custom_call.1} parent=1 // pred_fallthru
      _
    // Predicated region
    $region26: #{tpu_custom_call.1} parent=1 // pred_check
      _
    $region27: #{tpu_custom_call.1} parent=1 // pred_check_branch
      %552 = sbr.rel (0) target = $region29
    $region28: #{tpu_custom_call.1} parent=1 // pred_region
      %553 = dma.done [#allocation5], 256
    $region29: #{tpu_custom_call.1} parent=1 // pred_fallthru
      _
    %554 = vsyncpa [#allocation4], 1
    %555 = vsyncpa [#allocation7], 1
    %556 = vsyncpa [#allocation5], 1

// kernel: tpu_custom_call.1
$region0: #{tpu_custom_call.1}
  #allocation0 [shape = 'u32[]', space=smem, size = 0x4, offset = 0x4, fixed_abs, tag = 'smem constant byte address 0x4 - core index']
  #allocation1 [shape = 'u32[144,128]{1,0:T(1,128)}', space=vmem, size = 0x12000, scoped, tag = 'internal scratch']
  #allocation2 [shape = 'bf16[16,640]{1,0:T(16,128)(2,1)}', space=vmem, size = 0x5000, scoped, tag = 'scratch operand']
  %s0 = inlined_call_operand.hbm [shape: f32[16,128], index: 0, kind: input, shape index: {}]
  %s1 = inlined_call_operand.hbm [shape: bf16[640,128], index: 1, kind: input, shape index: {}]
  %s2 = inlined_call_operand.hbm [shape: f32[16,128], index: 2, kind: output, shape index: {}]
  %s3 = sld [smem:[#allocation0]]
  $region30: #{tpu_custom_call.1} parent=0
    _
  %s5 = ssub.s32 1, %s3
  %s6 = scalar_select 0, %s5, %s3
  $region1: #{tpu_custom_call.1} parent=0
    #allocation3 [shape = 'u8[8192]{0}', space=vmem, size = 0x2000, scoped, tag = 'input window, operand 0, single buffered']
    #allocation4 [shape = 's32[1]{0}', space=sflag, size = 0x4, scoped, tag = 'scoped memory for tpu_custom_call.1']
    #allocation5 [shape = 's32[1]{0}', space=sflag, size = 0x4, scoped, tag = 'scoped memory for tpu_custom_call.1']
    #allocation6 [shape = 'u8[163840]{0}', space=vmem, size = 0x28000, scoped, tag = 'input window, operand 1, single buffered']
    #allocation7 [shape = 's32[1]{0}', space=sflag, size = 0x4, scoped, tag = 'scoped memory for tpu_custom_call.1']
    #allocation8 [shape = 'u8[8192]{0}', space=vmem, size = 0x2000, scoped, tag = 'output window, operand 0, single buffered']
    %7 = vsyncpa [#allocation4], 0
    %8 = vsyncpa [#allocation7], 0
    %9 = vsyncpa [#allocation5], 0
    // Predicated region
    $region2: #{tpu_custom_call.1} parent=1 // pred_check
      _
    $region3: #{tpu_custom_call.1} parent=1 // pred_check_branch
      %11 = sbr.rel (0) target = $region5
    $region4: #{tpu_custom_call.1} parent=1 // pred_region
      %s13 = ssub.s32 256, 256
      %14 = vsyncadd [#allocation4], %s13
      %s15 = sshll.u32 [#allocation3], 4
      %s16 = int_to_ptr.vmem [resolvable:$true] %s15
      %21 = dma.hbm_to_vmem [thread:$0]  %s0, 256, %s16, [#allocation4], 128, 128, 8
    $region5: #{tpu_custom_call.1} parent=1 // pred_fallthru
      _
    // Predicated region
    $region6: #{tpu_custom_call.1} parent=1 // pred_check
      _
    $region7: #{tpu_custom_call.1} parent=1 // pred_check_branch
      %23 = sbr.rel (0) target = $region9
    $region8: #{tpu_custom_call.1} parent=1 // pred_region
      %s25 = ssub.s32 5120, 5120
      %26 = vsyncadd [#allocation7], %s25
      %s27 = sshll.u32 [#allocation6], 4
      %s28 = int_to_ptr.vmem [resolvable:$true] %s27
      %33 = dma.hbm_to_vmem [thread:$0]  %s1, 5120, %s28, [#allocation7], 64, 64, 4
    $region9: #{tpu_custom_call.1} parent=1 // pred_fallthru
      _
    // Predicated region
    $region10: #{tpu_custom_call.1} parent=1 // pred_check
      _
    $region11: #{tpu_custom_call.1} parent=1 // pred_check_branch
      %35 = sbr.rel (0) target = $region13
    $region12: #{tpu_custom_call.1} parent=1 // pred_region
      %36 = dma.done [#allocation4], 256
    $region13: #{tpu_custom_call.1} parent=1 // pred_fallthru
      _
    // Predicated region
    $region14: #{tpu_custom_call.1} parent=1 // pred_check
      _
    $region15: #{tpu_custom_call.1} parent=1 // pred_check_branch
      %38 = sbr.rel (0) target = $region17
    $region16: #{tpu_custom_call.1} parent=1 // pred_region
      %39 = dma.done [#allocation7], 5120
    $region17: #{tpu_custom_call.1} parent=1 // pred_fallthru
      _
    %p42 = scmp.eq.s32.totalorder 0, 0
    // Predicated region
    $region18: #{tpu_custom_call.1} parent=1 // pred_check
      %p43 = pneg %p42
    $region19: #{tpu_custom_call.1} parent=1 // pred_check_branch
      %45 = sbr.rel (%p43) target = $region21
    $region20: #{tpu_custom_call.1} parent=1 // pred_region
      %v46 = vld [vmem:[#allocation3] sm:$0xff]
      %v47 = vld [vmem:[#allocation3 + $0x8] sm:$0xff]
      %v48 = vtanh.pop %v46
      %v49 = vtanh.pop %v47
      %50 = vst [vmem:[#allocation2] sm:$0xff] 1065369472
      %v51 = vmul.f32 %v48, 4.0
      %v52 = vmul.f32 %v49, 4.0
      %v53 = vadd.f32 %v51, 0.0
      %v54 = vadd.f32 %v52, 0.0
      %v55 = vmul.f32 %v53, 0.5
      %v56 = vmul.f32 %v54, 0.5
      %v57 = vpack.c.bf16 %v56, %v55
      %58 = vst [vmem:[#allocation2 + $0x8] sm:$0xff] %v57
      %v59 = vmul.f32 %v48, 1.875
      %v60 = vmul.f32 %v49, 1.875
      %v61 = vadd.f32 %v59, 0.0
      %v62 = vadd.f32 %v60, 0.0
      %v63 = vmul.f32 %v61, %v55
      %v64 = vmul.f32 %v62, %v56
      %v65 = vsub.f32 %v63, 0.75
      %v66 = vsub.f32 %v64, 0.75
      %v67 = vpack.c.bf16 %v66, %v65
      %68 = vst [vmem:[#allocation2 + $0x10] sm:$0xff] %v67
      %v69 = vmul.f32 %v48, 1.8666667
      %v70 = vmul.f32 %v49, 1.8666667
      %v71 = vadd.f32 %v69, 0.0
      %v72 = vadd.f32 %v70, 0.0
      %v73 = vmul.f32 %v71, %v65
      %v74 = vmul.f32 %v72, %v66
      %v75 = vmul.f32 %v55, 0.8
      %v76 = vmul.f32 %v56, 0.8
      %v77 = vsub.f32 %v73, %v75
      %v78 = vsub.f32 %v74, %v76
      %v79 = vpack.c.bf16 %v78, %v77
      %80 = vst [vmem:[#allocation2 + $0x18] sm:$0xff] %v79
      %v81 = vmul.f32 %v61, %v77
      %v82 = vmul.f32 %v62, %v78
      %v83 = vmul.f32 %v65, 0.8333333
      %v84 = vmul.f32 %v66, 0.8333333
      %v85 = vsub.f32 %v81, %v83
      %v86 = vsub.f32 %v82, %v84
      %v87 = vpack.c.bf16 %v86, %v85
      %88 = vst [vmem:[#allocation2 + $0x20] sm:$0xff] %v87
    $region21: #{tpu_custom_call.1} parent=1 // pred_fallthru
      _
    %v89 = vld [vmem:[#allocation2] sm:$0xff]
    %v90 = vld [vmem:[#allocation2 + $0x8] sm:$0xff]
    %v91 = vld [vmem:[#allocation2 + $0x10] sm:$0xff]
    %v92 = vld [vmem:[#allocation2 + $0x18] sm:$0xff]
    %v93 = vld [vmem:[#allocation2 + $0x20] sm:$0xff]
    %v94 = vld [vmem:[#allocation6] sm:$0xf]
    %v95 = vld [vmem:[#allocation6 + $0x4] sm:$0xf]
    %v96 = vld [vmem:[#allocation6 + $0x8] sm:$0xf]
    %v97 = vld [vmem:[#allocation6 + $0xc] sm:$0xf]
    %v98 = vld [vmem:[#allocation6 + $0x10] sm:$0xf]
    %v99 = vld [vmem:[#allocation6 + $0x14] sm:$0xf]
    %v100 = vld [vmem:[#allocation6 + $0x18] sm:$0xf]
    %v101 = vld [vmem:[#allocation6 + $0x1c] sm:$0xf]
    %v102 = vld [vmem:[#allocation6 + $0x20] sm:$0xf]
    %v103 = vld [vmem:[#allocation6 + $0x24] sm:$0xf]
    %v104 = vld [vmem:[#allocation6 + $0x28] sm:$0xf]
    %v105 = vld [vmem:[#allocation6 + $0x2c] sm:$0xf]
    %v106 = vld [vmem:[#allocation6 + $0x30] sm:$0xf]
    %v107 = vld [vmem:[#allocation6 + $0x34] sm:$0xf]
    %v108 = vld [vmem:[#allocation6 + $0x38] sm:$0xf]
    %v109 = vld [vmem:[#allocation6 + $0x3c] sm:$0xf]
    %v110 = vld [vmem:[#allocation6 + $0x40] sm:$0xf]
    %v111 = vld [vmem:[#allocation6 + $0x44] sm:$0xf]
    %v112 = vld [vmem:[#allocation6 + $0x48] sm:$0xf]
    %v113 = vld [vmem:[#allocation6 + $0x4c] sm:$0xf]
    %v114 = vld [vmem:[#allocation6 + $0x50] sm:$0xf]
    %v115 = vld [vmem:[#allocation6 + $0x54] sm:$0xf]
    %v116 = vld [vmem:[#allocation6 + $0x58] sm:$0xf]
    %v117 = vld [vmem:[#allocation6 + $0x5c] sm:$0xf]
    %v118 = vld [vmem:[#allocation6 + $0x60] sm:$0xf]
    %v119 = vld [vmem:[#allocation6 + $0x64] sm:$0xf]
    %v120 = vld [vmem:[#allocation6 + $0x68] sm:$0xf]
    %v121 = vld [vmem:[#allocation6 + $0x6c] sm:$0xf]
    %v122 = vld [vmem:[#allocation6 + $0x70] sm:$0xf]
    %v123 = vld [vmem:[#allocation6 + $0x74] sm:$0xf]
    %v124 = vld [vmem:[#allocation6 + $0x78] sm:$0xf]
    %v125 = vld [vmem:[#allocation6 + $0x7c] sm:$0xf]
    %v126 = vld [vmem:[#allocation6 + $0x80] sm:$0xf]
    %v127 = vld [vmem:[#allocation6 + $0x84] sm:$0xf]
    %v128 = vld [vmem:[#allocation6 + $0x88] sm:$0xf]
    %v129 = vld [vmem:[#allocation6 + $0x8c] sm:$0xf]
    %v130 = vld [vmem:[#allocation6 + $0x90] sm:$0xf]
    %v131 = vld [vmem:[#allocation6 + $0x94] sm:$0xf]
    %v132 = vld [vmem:[#allocation6 + $0x98] sm:$0xf]
    %v133 = vld [vmem:[#allocation6 + $0x9c] sm:$0xf]
    %v134 = vld [vmem:[#allocation6 + $0xa0] sm:$0xf]
    %v135 = vld [vmem:[#allocation6 + $0xa4] sm:$0xf]
    %v136 = vld [vmem:[#allocation6 + $0xa8] sm:$0xf]
    %v137 = vld [vmem:[#allocation6 + $0xac] sm:$0xf]
    %v138 = vld [vmem:[#allocation6 + $0xb0] sm:$0xf]
    %v139 = vld [vmem:[#allocation6 + $0xb4] sm:$0xf]
    %v140 = vld [vmem:[#allocation6 + $0xb8] sm:$0xf]
    %v141 = vld [vmem:[#allocation6 + $0xbc] sm:$0xf]
    %v142 = vld [vmem:[#allocation6 + $0xc0] sm:$0xf]
    %v143 = vld [vmem:[#allocation6 + $0xc4] sm:$0xf]
    %v144 = vld [vmem:[#allocation6 + $0xc8] sm:$0xf]
    %v145 = vld [vmem:[#allocation6 + $0xcc] sm:$0xf]
    %v146 = vld [vmem:[#allocation6 + $0xd0] sm:$0xf]
    %v147 = vld [vmem:[#allocation6 + $0xd4] sm:$0xf]
    %v148 = vld [vmem:[#allocation6 + $0xd8] sm:$0xf]
    %v149 = vld [vmem:[#allocation6 + $0xdc] sm:$0xf]
    %v150 = vld [vmem:[#allocation6 + $0xe0] sm:$0xf]
    %v151 = vld [vmem:[#allocation6 + $0xe4] sm:$0xf]
    %v152 = vld [vmem:[#allocation6 + $0xe8] sm:$0xf]
    %v153 = vld [vmem:[#allocation6 + $0xec] sm:$0xf]
    %v154 = vld [vmem:[#allocation6 + $0xf0] sm:$0xf]
    %v155 = vld [vmem:[#allocation6 + $0xf4] sm:$0xf]
    %v156 = vld [vmem:[#allocation6 + $0xf8] sm:$0xf]
    %v157 = vld [vmem:[#allocation6 + $0xfc] sm:$0xf]
    %v158 = vld [vmem:[#allocation6 + $0x100] sm:$0xf]
    %v159 = vld [vmem:[#allocation6 + $0x104] sm:$0xf]
    %v160 = vld [vmem:[#allocation6 + $0x108] sm:$0xf]
    %v161 = vld [vmem:[#allocation6 + $0x10c] sm:$0xf]
    %v162 = vld [vmem:[#allocation6 + $0x110] sm:$0xf]
    %v163 = vld [vmem:[#allocation6 + $0x114] sm:$0xf]
    %v164 = vld [vmem:[#allocation6 + $0x118] sm:$0xf]
    %v165 = vld [vmem:[#allocation6 + $0x11c] sm:$0xf]
    %v166 = vld [vmem:[#allocation6 + $0x120] sm:$0xf]
    %v167 = vld [vmem:[#allocation6 + $0x124] sm:$0xf]
    %v168 = vld [vmem:[#allocation6 + $0x128] sm:$0xf]
    %v169 = vld [vmem:[#allocation6 + $0x12c] sm:$0xf]
    %v170 = vld [vmem:[#allocation6 + $0x130] sm:$0xf]
    %v171 = vld [vmem:[#allocation6 + $0x134] sm:$0xf]
    %v172 = vld [vmem:[#allocation6 + $0x138] sm:$0xf]
    %v173 = vld [vmem:[#allocation6 + $0x13c] sm:$0xf]
    %v254 = vunpack.c.l.b16 %v94
    %v255 = vunpack.c.l.b16 %v95
    %v256 = vunpack.c.l.b16 %v96
    %v257 = vunpack.c.l.b16 %v97
    %v258 = vunpack.c.l.b16 %v98
    %v259 = vunpack.c.l.b16 %v99
    %v260 = vunpack.c.l.b16 %v100
    %v261 = vunpack.c.l.b16 %v101
    %v262 = vunpack.c.l.b16 %v102
    %v263 = vunpack.c.l.b16 %v103
    %v264 = vunpack.c.l.b16 %v104
    %v265 = vunpack.c.l.b16 %v105
    %v266 = vunpack.c.l.b16 %v106
    %v267 = vunpack.c.l.b16 %v107
    %v268 = vunpack.c.l.b16 %v108
    %v269 = vunpack.c.l.b16 %v109
    %v270 = vunpack.c.l.b16 %v110
    %v271 = vunpack.c.l.b16 %v111
    %v272 = vunpack.c.l.b16 %v112
    %v273 = vunpack.c.l.b16 %v113
    %v274 = vunpack.c.l.b16 %v114
    %v275 = vunpack.c.l.b16 %v115
    %v276 = vunpack.c.l.b16 %v116
    %v277 = vunpack.c.l.b16 %v117
    %v278 = vunpack.c.l.b16 %v118
    %v279 = vunpack.c.l.b16 %v119
    %v280 = vunpack.c.l.b16 %v120
    %v281 = vunpack.c.l.b16 %v121
    %v282 = vunpack.c.l.b16 %v122
    %v283 = vunpack.c.l.b16 %v123
    %v284 = vunpack.c.l.b16 %v124
    %v285 = vunpack.c.l.b16 %v125
    %v286 = vunpack.c.l.b16 %v126
    %v287 = vunpack.c.l.b16 %v127
    %v288 = vunpack.c.l.b16 %v128
    %v289 = vunpack.c.l.b16 %v129
    %v290 = vunpack.c.l.b16 %v130
    %v291 = vunpack.c.l.b16 %v131
    %v292 = vunpack.c.l.b16 %v132
    %v293 = vunpack.c.l.b16 %v133
    %v294 = vunpack.c.l.b16 %v134
    %v295 = vunpack.c.l.b16 %v135
    %v296 = vunpack.c.l.b16 %v136
    %v297 = vunpack.c.l.b16 %v137
    %v298 = vunpack.c.l.b16 %v138
    %v299 = vunpack.c.l.b16 %v139
    %v300 = vunpack.c.l.b16 %v140
    %v301 = vunpack.c.l.b16 %v141
    %v302 = vunpack.c.l.b16 %v142
    %v303 = vunpack.c.l.b16 %v143
    %v304 = vunpack.c.l.b16 %v144
    %v305 = vunpack.c.l.b16 %v145
    %v306 = vunpack.c.l.b16 %v146
    %v307 = vunpack.c.l.b16 %v147
    %v308 = vunpack.c.l.b16 %v148
    %v309 = vunpack.c.l.b16 %v149
    %v310 = vunpack.c.l.b16 %v150
    %v311 = vunpack.c.l.b16 %v151
    %v312 = vunpack.c.l.b16 %v152
    %v313 = vunpack.c.l.b16 %v153
    %v314 = vunpack.c.l.b16 %v154
    %v315 = vunpack.c.l.b16 %v155
    %v316 = vunpack.c.l.b16 %v156
    %v317 = vunpack.c.l.b16 %v157
    %v318 = vunpack.c.l.b16 %v158
    %v319 = vunpack.c.l.b16 %v159
    %v320 = vunpack.c.l.b16 %v160
    %v321 = vunpack.c.l.b16 %v161
    %v322 = vunpack.c.l.b16 %v162
    %v323 = vunpack.c.l.b16 %v163
    %v324 = vunpack.c.l.b16 %v164
    %v325 = vunpack.c.l.b16 %v165
    %v326 = vunpack.c.l.b16 %v166
    %v327 = vunpack.c.l.b16 %v167
    %v328 = vunpack.c.l.b16 %v168
    %v329 = vunpack.c.l.b16 %v169
    %v330 = vunpack.c.l.b16 %v170
    %v331 = vunpack.c.l.b16 %v171
    %v332 = vunpack.c.l.b16 %v172
    %v333 = vunpack.c.l.b16 %v173
    %v334 = vpack.c.b16 %v255, %v254
    %v335 = vpack.c.b16 %v257, %v256
    %v336 = vpack.c.b16 %v259, %v258
    %v337 = vpack.c.b16 %v261, %v260
    %v338 = vpack.c.b16 %v263, %v262
    %v339 = vpack.c.b16 %v265, %v264
    %v340 = vpack.c.b16 %v267, %v266
    %v341 = vpack.c.b16 %v269, %v268
    %v342 = vpack.c.b16 %v271, %v270
    %v343 = vpack.c.b16 %v273, %v272
    %v344 = vpack.c.b16 %v275, %v274
    %v345 = vpack.c.b16 %v277, %v276
    %v346 = vpack.c.b16 %v279, %v278
    %v347 = vpack.c.b16 %v281, %v280
    %v348 = vpack.c.b16 %v283, %v282
    %v349 = vpack.c.b16 %v285, %v284
    %v350 = vpack.c.b16 %v287, %v286
    %v351 = vpack.c.b16 %v289, %v288
    %v352 = vpack.c.b16 %v291, %v290
    %v353 = vpack.c.b16 %v293, %v292
    %v354 = vpack.c.b16 %v295, %v294
    %v355 = vpack.c.b16 %v297, %v296
    %v356 = vpack.c.b16 %v299, %v298
    %v357 = vpack.c.b16 %v301, %v300
    %v358 = vpack.c.b16 %v303, %v302
    %v359 = vpack.c.b16 %v305, %v304
    %v360 = vpack.c.b16 %v307, %v306
    %v361 = vpack.c.b16 %v309, %v308
    %v362 = vpack.c.b16 %v311, %v310
    %v363 = vpack.c.b16 %v313, %v312
    %v364 = vpack.c.b16 %v315, %v314
    %v365 = vpack.c.b16 %v317, %v316
    %v366 = vpack.c.b16 %v319, %v318
    %v367 = vpack.c.b16 %v321, %v320
    %v368 = vpack.c.b16 %v323, %v322
    %v369 = vpack.c.b16 %v325, %v324
    %v370 = vpack.c.b16 %v327, %v326
    %v371 = vpack.c.b16 %v329, %v328
    %v372 = vpack.c.b16 %v331, %v330
    %v373 = vpack.c.b16 %v333, %v332
    %414 = vmatprep.subr.bf16.mxu0 0
    %415 = vmatpush1.bf16.msra.mxu0 %v334
    %416 = vmatprep.subr.bf16.mxu0 0
    %417 = vmatpush1.bf16.msra.mxu0 %v335
    %418 = vmatprep.subr.bf16.mxu0 0
    %419 = vmatpush1.bf16.msra.mxu0 %v336
    %420 = vmatprep.subr.bf16.mxu0 0
    %421 = vmatpush1.bf16.msra.mxu0 %v337
    %422 = vmatprep.subr.bf16.mxu0 0
    %423 = vmatpush1.bf16.msra.mxu0 %v338
    %424 = vmatprep.subr.bf16.mxu0 0
    %425 = vmatpush1.bf16.msra.mxu0 %v339
    %426 = vmatprep.subr.bf16.mxu0 0
    %427 = vmatpush1.bf16.msra.mxu0 %v340
    %428 = vmatprep.subr.bf16.mxu0 0
    %429 = vmatpush1.bf16.msra.mxu0 %v341
    %430 = vmatprep.subr.bf16.mxu0 0
    %431 = vmatpush1.bf16.msra.mxu0 %v342
    %432 = vmatprep.subr.bf16.mxu0 0
    %433 = vmatpush1.bf16.msra.mxu0 %v343
    %434 = vmatprep.subr.bf16.mxu0 0
    %435 = vmatpush1.bf16.msra.mxu0 %v344
    %436 = vmatprep.subr.bf16.mxu0 0
    %437 = vmatpush1.bf16.msra.mxu0 %v345
    %438 = vmatprep.subr.bf16.mxu0 0
    %439 = vmatpush1.bf16.msra.mxu0 %v346
    %440 = vmatprep.subr.bf16.mxu0 0
    %441 = vmatpush1.bf16.msra.mxu0 %v347
    %442 = vmatprep.subr.bf16.mxu0 0
    %443 = vmatpush1.bf16.msra.mxu0 %v348
    %444 = vmatprep.subr.bf16.mxu0 0
    %445 = vmatpush1.bf16.msra.mxu0 %v349
    %446 = vmatprep.mubr.bf16.mxu0 %v90
    %447 = vmatmul.mubr.bf16.gmra.mrb[0].mxu0 %v89
    %v448 = vpop.f32.mrb[0].mxu0
    %v449 = vadd.f32 0.0, %v448
    %v450 = vpop.f32.mrb[0].mxu0
    %v451 = vpop.f32.mrb[0].mxu0
    %v452 = vadd.f32 0.0, %v451
    %v453 = vpop.f32.mrb[0].mxu0
    %454 = vdwg.mxu0
    %455 = vmatprep.subr.bf16.mxu0 0
    %456 = vmatpush1.bf16.msra.mxu0 %v350
    %457 = vmatprep.subr.bf16.mxu0 0
    %458 = vmatpush1.bf16.msra.mxu0 %v351
    %459 = vmatprep.subr.bf16.mxu0 0
    %460 = vmatpush1.bf16.msra.mxu0 %v352
    %461 = vmatprep.subr.bf16.mxu0 0
    %462 = vmatpush1.bf16.msra.mxu0 %v353
    %463 = vmatprep.subr.bf16.mxu0 0
    %464 = vmatpush1.bf16.msra.mxu0 %v354
    %465 = vmatprep.subr.bf16.mxu0 0
    %466 = vmatpush1.bf16.msra.mxu0 %v355
    %467 = vmatprep.subr.bf16.mxu0 0
    %468 = vmatpush1.bf16.msra.mxu0 %v356
    %469 = vmatprep.subr.bf16.mxu0 0
    %470 = vmatpush1.bf16.msra.mxu0 %v357
    %471 = vmatprep.subr.bf16.mxu0 0
    %472 = vmatpush1.bf16.msra.mxu0 %v358
    %473 = vmatprep.subr.bf16.mxu0 0
    %474 = vmatpush1.bf16.msra.mxu0 %v359
    %475 = vmatprep.subr.bf16.mxu0 0
    %476 = vmatpush1.bf16.msra.mxu0 %v360
    %477 = vmatprep.subr.bf16.mxu0 0
    %478 = vmatpush1.bf16.msra.mxu0 %v361
    %479 = vmatprep.subr.bf16.mxu0 0
    %480 = vmatpush1.bf16.msra.mxu0 %v362
    %481 = vmatprep.subr.bf16.mxu0 0
    %482 = vmatpush1.bf16.msra.mxu0 %v363
    %483 = vmatprep.subr.bf16.mxu0 0
    %484 = vmatpush1.bf16.msra.mxu0 %v364
    %485 = vmatprep.subr.bf16.mxu0 0
    %486 = vmatpush1.bf16.msra.mxu0 %v365
    %487 = vmatprep.mubr.bf16.mxu0 %v92
    %488 = vmatmul.mubr.bf16.gmra.mrb[0].mxu0 %v91
    %v489 = vpop.f32.mrb[0].mxu0
    %v490 = vadd.f32 %v449, %v489
    %v491 = vpop.f32.mrb[0].mxu0
    %v492 = vpop.f32.mrb[0].mxu0
    %v493 = vadd.f32 %v452, %v492
    %v494 = vpop.f32.mrb[0].mxu0
    %495 = vdwg.mxu0
    %496 = vmatprep.subr.bf16.mxu0 0
    %497 = vmatpush1.bf16.msra.mxu0 %v366
    %498 = vmatprep.subr.bf16.mxu0 0
    %499 = vmatpush1.bf16.msra.mxu0 %v367
    %500 = vmatprep.subr.bf16.mxu0 0
    %501 = vmatpush1.bf16.msra.mxu0 %v368
    %502 = vmatprep.subr.bf16.mxu0 0
    %503 = vmatpush1.bf16.msra.mxu0 %v369
    %504 = vmatprep.subr.bf16.mxu0 0
    %505 = vmatpush1.bf16.msra.mxu0 %v370
    %506 = vmatprep.subr.bf16.mxu0 0
    %507 = vmatpush1.bf16.msra.mxu0 %v371
    %508 = vmatprep.subr.bf16.mxu0 0
    %509 = vmatpush1.bf16.msra.mxu0 %v372
    %510 = vmatprep.subr.bf16.mxu0 0
    %511 = vmatpush1.bf16.msra.mxu0 %v373
    %512 = vmatprep.subr.bf16.mxu0 0
    %513 = vmatpush1.bf16.msra.mxu0 0
    %514 = vmatprep.subr.bf16.mxu0 0
    %515 = vmatpush1.bf16.msra.mxu0 0
    %516 = vmatprep.subr.bf16.mxu0 0
    %517 = vmatpush1.bf16.msra.mxu0 0
    %518 = vmatprep.subr.bf16.mxu0 0
    %519 = vmatpush1.bf16.msra.mxu0 0
    %520 = vmatprep.subr.bf16.mxu0 0
    %521 = vmatpush1.bf16.msra.mxu0 0
    %522 = vmatprep.subr.bf16.mxu0 0
    %523 = vmatpush1.bf16.msra.mxu0 0
    %524 = vmatprep.subr.bf16.mxu0 0
    %525 = vmatpush1.bf16.msra.mxu0 0
    %526 = vmatprep.subr.bf16.mxu0 0
    %527 = vmatpush1.bf16.msra.mxu0 0
    %528 = vmatprep.mubr.bf16.mxu0 0
    %529 = vmatmul.mubr.bf16.gmra.mrb[0].mxu0 %v93
    %v530 = vpop.f32.mrb[0].mxu0
    %v531 = vadd.f32 %v490, %v530
    %v532 = vpop.f32.mrb[0].mxu0
    %v533 = vpop.f32.mrb[0].mxu0
    %v534 = vadd.f32 %v493, %v533
    %v535 = vpop.f32.mrb[0].mxu0
    %536 = vdwg.mxu0
    %537 = vst [vmem:[#allocation8] sm:$0xff] %v531
    %538 = vst [vmem:[#allocation8 + $0x8] sm:$0xff] %v534
    // Predicated region
    $region22: #{tpu_custom_call.1} parent=1 // pred_check
      _
    $region23: #{tpu_custom_call.1} parent=1 // pred_check_branch
      %540 = sbr.rel (0) target = $region25
    $region24: #{tpu_custom_call.1} parent=1 // pred_region
      %s542 = ssub.s32 256, 256
      %543 = vsyncadd [#allocation5], %s542
      %s544 = sshll.u32 [#allocation8], 4
      %s545 = int_to_ptr.vmem [resolvable:$true] %s544
      %550 = dma.vmem_to_hbm [thread:$0]  %s545, 256, %s2, [#allocation5], 128, 128, 8
    $region25: #{tpu_custom_call.1} parent=1 // pred_fallthru
      _
    // Predicated region
    $region26: #{tpu_custom_call.1} parent=1 // pred_check
      _
    $region27: #{tpu_custom_call.1} parent=1 // pred_check_branch
      %552 = sbr.rel (0) target = $region29
    $region28: #{tpu_custom_call.1} parent=1 // pred_region
      %553 = dma.done [#allocation5], 256
    $region29: #{tpu_custom_call.1} parent=1 // pred_fallthru
      _
    %554 = vsyncpa [#allocation4], 1
    %555 = vsyncpa [#allocation7], 1
    %556 = vsyncpa [#allocation5], 1

</llo_original>
